<compile_context>
chip_gen: v5e
topology: v5e:2x2
jax: 0.10.0
libtpu: 0.0.40
codegen_flags: <defaults>
</compile_context>

<pallas_src>
import jax
import jax.numpy as jnp
from jax.experimental import pallas as pl
from jax.experimental.pallas import tpu as pltpu

_MAX_TM = 512  # max activation-tile rows per grid step


def _round_up(x, m):
    return (x + m - 1) // m * m


def _tiling(batch):
    """Return (padded_batch, tile_rows).

    - tile rows are a multiple of 8 (f32 sublane quantum)
    - tiny batches (<=8) pad only to 8 and run one step (latency path)
    - otherwise cap the tile at _MAX_TM but force >= 2 grid steps so the
      "parallel" batch axis can be split across both v7x TensorCores.
    """
    b8 = _round_up(max(batch, 1), 8)
    if b8 <= 8:
        return b8, b8
    tm = min(_MAX_TM, _round_up((b8 + 1) // 2, 8))
    return _round_up(b8, tm), tm


def _nn_baseline_kernel(ix_ref, emb_ref, w1a_ref, w1b_ref, b1_ref, w2_ref, b2_ref, o_ref):
    tm = ix_ref.shape[0]
    seq = emb_ref.shape[0]

    ix = ix_ref[...]                                          # (tm, 2) int32
    pos = jax.lax.broadcasted_iota(jnp.int32, (tm, seq), 1)   # (tm, seq)

    # Gather via one-hot matmul on the MXU (exact: 1.0*v + 0.0*rest == v).
    oh1 = (ix[:, 0:1] == pos).astype(jnp.float32)             # embeds[event_ix[:,0]]
    oh2 = (ix[:, 1:2] == pos).astype(jnp.float32)             # embeds[event_ix[:,1]]
    emb = emb_ref[...]                                        # (seq, emb_dim), resident
    x1 = jnp.dot(oh1, emb, preferred_element_type=jnp.float32)
    x2 = jnp.dot(oh2, emb, preferred_element_type=jnp.float32)

    # h = relu(concat(x1, x2) @ W1 + b1) == relu(x1 @ W1[:e] + x2 @ W1[e:] + b1)
    h = (jnp.dot(x1, w1a_ref[...], preferred_element_type=jnp.float32)
         + jnp.dot(x2, w1b_ref[...], preferred_element_type=jnp.float32)
         + b1_ref[...])
    h = jnp.maximum(h, 0.0)

    # out = h @ W2 + b2  -- stored unpadded (tm, out_dim): minimal HBM writeback.
    o_ref[...] = jnp.dot(h, w2_ref[...], preferred_element_type=jnp.float32) + b2_ref[...]


@jax.jit
def nn_baseline_forward(embeds, event_ix, w1, b1, w2, b2):
    """Batched Pallas equivalent of h_nn2o(relu(h_word2h_nn(h_word))).

    embeds:   (seq_len, embedding_dim)            f32  (emb_cache output)
    event_ix: (B, 2)                              int  (pairs of event indices)
    w1:       (2*embedding_dim, nn_hidden_dim)    f32  (= Linear.weight.T)
    b1:       (nn_hidden_dim,)                    f32
    w2:       (nn_hidden_dim, output_dim)         f32  (= Linear.weight.T)
    b2:       (output_dim,)                       f32
    returns   (B, output_dim); row b equals the module forward on pair b.
    """
    seq_len, emb_dim = embeds.shape
    B = event_ix.shape[0]
    hidden = w1.shape[1]
    out_dim = w2.shape[1]

    bp, tm = _tiling(B)

    # Only pad the index stream when needed (index 0 is valid; padded rows are
    # sliced off below).  No padded copy of any large activation array.
    ix = event_ix.astype(jnp.int32)
    ix_p = ix if bp == B else jnp.zeros((bp, 2), jnp.int32).at[:B].set(ix)

    w1a = w1[:emb_dim]          # (emb_dim, hidden)
    w1b = w1[emb_dim:]          # (emb_dim, hidden)
    b1r = b1.reshape(1, hidden)
    b2r = b2.reshape(1, out_dim)

    out = pl.pallas_call(
        _nn_baseline_kernel,
        out_shape=jax.ShapeDtypeStruct((bp, out_dim), jnp.float32),
        grid_spec=pltpu.PrefetchScalarGridSpec(
            num_scalar_prefetch=0,
            grid=(bp // tm,),
            in_specs=[
                pl.BlockSpec((tm, 2), lambda i: (i, 0)),             # event indices (tiled)
                pl.BlockSpec((seq_len, emb_dim), lambda i: (0, 0)),  # embeds (resident)
                pl.BlockSpec((emb_dim, hidden), lambda i: (0, 0)),   # W1 top half (resident)
                pl.BlockSpec((emb_dim, hidden), lambda i: (0, 0)),   # W1 bottom half (resident)
                pl.BlockSpec((1, hidden), lambda i: (0, 0)),         # b1 (resident)
                pl.BlockSpec((hidden, out_dim), lambda i: (0, 0)),   # W2 (resident)
                pl.BlockSpec((1, out_dim), lambda i: (0, 0)),        # b2 (resident)
            ],
            out_specs=pl.BlockSpec((tm, out_dim), lambda i: (i, 0)),
        ),
        compiler_params=pltpu.CompilerParams(
            dimension_semantics=("parallel",),
        ),
    )(ix_p, embeds.astype(jnp.float32), w1a, w1b, b1r, w2, b2r)
    return out[:B]


if __name__ == "__main__":
    # Small deterministic configuration consistent with the module defaults.
    embedding_dim = 32
    nn_hidden_dim = 32
    output_dim = 4
    seq_len = 8
    vocab_size = 16
    num_pairs = 128  # batch of event-index pairs processed in one pallas_call

    key = jax.random.PRNGKey(0)
    k_emb, k_ix, k_w1, k_b1, k_w2, k_b2 = jax.random.split(key, 6)

    # TODO(synk): emb_cache.retrieveEmbeddings is an external (host) cache
    # lookup; it is emulated here as an in-script embedding-table gather.
    emb_table = jax.random.normal(k_emb, (vocab_size, embedding_dim), jnp.float32)
    token_ids = jnp.arange(seq_len, dtype=jnp.int32) % vocab_size
    embeds = emb_table[token_ids]                          # (seq_len, emb_dim)

    # batch of temprel.event_ix pairs
    event_ix = jax.random.randint(k_ix, (num_pairs, 2), 0, seq_len)

    # deterministic parameters (nn.Linear stores (out,in); pass the transpose)
    bound1 = 1.0 / jnp.sqrt(2.0 * embedding_dim)
    w1 = jax.random.uniform(k_w1, (2 * embedding_dim, nn_hidden_dim),
                            jnp.float32, -bound1, bound1)
    b1 = jax.random.uniform(k_b1, (nn_hidden_dim,), jnp.float32, -bound1, bound1)
    bound2 = 1.0 / jnp.sqrt(float(nn_hidden_dim))
    w2 = jax.random.uniform(k_w2, (nn_hidden_dim, output_dim),
                            jnp.float32, -bound2, bound2)
    b2 = jax.random.uniform(k_b2, (output_dim,), jnp.float32, -bound2, bound2)

    # --- batched run ---------------------------------------------------------
    out = jax.block_until_ready(nn_baseline_forward(embeds, event_ix, w1, b1, w2, b2))

    # plain-JAX reference (module forward applied per row)
    h_word = embeds[event_ix].reshape(num_pairs, 2 * embedding_dim)
    ref = jnp.maximum(h_word @ w1 + b1, 0.0) @ w2 + b2
    assert out.shape == (num_pairs, output_dim)
    assert jnp.allclose(out, ref, atol=1e-5, rtol=1e-5)

    # --- exact single-sample module semantics (h_word is a (1, 2*emb) row) ---
    out1 = jax.block_until_ready(nn_baseline_forward(embeds, event_ix[:1], w1, b1, w2, b2))
    assert out1.shape == (1, output_dim)
    assert jnp.allclose(out1, ref[:1], atol=1e-5, rtol=1e-5)

    print("KERNEL_OK")
</pallas_src>

<mosaic_0001>
module attributes {stable_mosaic.version = 11 : i64} {
  func.func @_nn_baseline_kernel(%arg0: i32, %arg1: memref<64x2xi32, #tpu.memory_space<vmem>>, %arg2: memref<8x32xf32, #tpu.memory_space<vmem>>, %arg3: memref<32x32xf32, #tpu.memory_space<vmem>>, %arg4: memref<32x32xf32, #tpu.memory_space<vmem>>, %arg5: memref<1x32xf32, #tpu.memory_space<vmem>>, %arg6: memref<32x4xf32, #tpu.memory_space<vmem>>, %arg7: memref<1x4xf32, #tpu.memory_space<vmem>>, %arg8: memref<64x4xf32, #tpu.memory_space<vmem>>) attributes {dimension_semantics = [#tpu.dimension_semantics<parallel>], iteration_bounds = array<i64: 2>, scalar_prefetch = 0 : i64, scratch_operands = 0 : i64, tpu.core_type = #tpu.core_type<tc>, window_params = [{transform_indices = @transform_0, window_bounds = array<i64: 64, 2>}, {pipeline_mode = #tpu.pipeline_mode<synchronous>, transform_indices = @transform_1, window_bounds = array<i64: 8, 32>}, {pipeline_mode = #tpu.pipeline_mode<synchronous>, transform_indices = @transform_2, window_bounds = array<i64: 32, 32>}, {pipeline_mode = #tpu.pipeline_mode<synchronous>, transform_indices = @transform_3, window_bounds = array<i64: 32, 32>}, {pipeline_mode = #tpu.pipeline_mode<synchronous>, transform_indices = @transform_4, window_bounds = array<i64: 1, 32>}, {pipeline_mode = #tpu.pipeline_mode<synchronous>, transform_indices = @transform_5, window_bounds = array<i64: 32, 4>}, {pipeline_mode = #tpu.pipeline_mode<synchronous>, transform_indices = @transform_6, window_bounds = array<i64: 1, 4>}, {transform_indices = @transform_7, window_bounds = array<i64: 64, 4>}]} {
    %c0 = arith.constant 0 : index
    %c0_0 = arith.constant 0 : index
    %0 = vector.load %arg1[%c0, %c0_0] : memref<64x2xi32, #tpu.memory_space<vmem>>, vector<64x2xi32>
    %1 = tpu.iota {dimensions = array<i32: 1>} : vector<64x8xi32>
    %2 = vector.extract_strided_slice %0 {offsets = [0, 0], sizes = [64, 1], strides = [1, 1]} : vector<64x2xi32> to vector<64x1xi32>
    %3 = vector.broadcast %2 : vector<64x1xi32> to vector<64x8xi32>
    %4 = arith.cmpi eq, %3, %1 : vector<64x8xi32>
    %5 = arith.extui %4 : vector<64x8xi1> to vector<64x8xi32>
    %6 = arith.sitofp %5 : vector<64x8xi32> to vector<64x8xf32>
    %7 = vector.extract_strided_slice %0 {offsets = [0, 1], sizes = [64, 1], strides = [1, 1]} : vector<64x2xi32> to vector<64x1xi32>
    %8 = vector.broadcast %7 : vector<64x1xi32> to vector<64x8xi32>
    %9 = arith.cmpi eq, %8, %1 : vector<64x8xi32>
    %10 = arith.extui %9 : vector<64x8xi1> to vector<64x8xi32>
    %11 = arith.sitofp %10 : vector<64x8xi32> to vector<64x8xf32>
    %c0_1 = arith.constant 0 : index
    %c0_2 = arith.constant 0 : index
    %12 = vector.load %arg2[%c0_1, %c0_2] : memref<8x32xf32, #tpu.memory_space<vmem>>, vector<8x32xf32>
    %cst = arith.constant dense<0.000000e+00> : vector<64x32xf32>
    %13 = tpu.matmul %6, %12, %cst {dimension_numbers = #tpu.dot_dimension_numbers<[1], [0], [0], [1], [0, 0, 1, 1], [], []>} : vector<64x8xf32>, vector<8x32xf32>, vector<64x32xf32> -> vector<64x32xf32>
    %cst_3 = arith.constant dense<0.000000e+00> : vector<64x32xf32>
    %14 = tpu.matmul %11, %12, %cst_3 {dimension_numbers = #tpu.dot_dimension_numbers<[1], [0], [0], [1], [0, 0, 1, 1], [], []>} : vector<64x8xf32>, vector<8x32xf32>, vector<64x32xf32> -> vector<64x32xf32>
    %c0_4 = arith.constant 0 : index
    %c0_5 = arith.constant 0 : index
    %15 = vector.load %arg3[%c0_4, %c0_5] : memref<32x32xf32, #tpu.memory_space<vmem>>, vector<32x32xf32>
    %cst_6 = arith.constant dense<0.000000e+00> : vector<64x32xf32>
    %16 = tpu.matmul %13, %15, %cst_6 {dimension_numbers = #tpu.dot_dimension_numbers<[1], [0], [0], [1], [0, 0, 1, 1], [], []>} : vector<64x32xf32>, vector<32x32xf32>, vector<64x32xf32> -> vector<64x32xf32>
    %c0_7 = arith.constant 0 : index
    %c0_8 = arith.constant 0 : index
    %17 = vector.load %arg4[%c0_7, %c0_8] : memref<32x32xf32, #tpu.memory_space<vmem>>, vector<32x32xf32>
    %cst_9 = arith.constant dense<0.000000e+00> : vector<64x32xf32>
    %18 = tpu.matmul %14, %17, %cst_9 {dimension_numbers = #tpu.dot_dimension_numbers<[1], [0], [0], [1], [0, 0, 1, 1], [], []>} : vector<64x32xf32>, vector<32x32xf32>, vector<64x32xf32> -> vector<64x32xf32>
    %19 = arith.addf %16, %18 : vector<64x32xf32>
    %c0_10 = arith.constant 0 : index
    %c0_11 = arith.constant 0 : index
    %20 = vector.load %arg5[%c0_10, %c0_11] : memref<1x32xf32, #tpu.memory_space<vmem>>, vector<1x32xf32>
    %21 = vector.broadcast %20 : vector<1x32xf32> to vector<64x32xf32>
    %22 = arith.addf %19, %21 : vector<64x32xf32>
    %cst_12 = arith.constant 0.000000e+00 : f32
    %23 = vector.broadcast %cst_12 : f32 to vector<64x32xf32>
    %24 = arith.maximumf %22, %23 : vector<64x32xf32>
    %c0_13 = arith.constant 0 : index
    %c0_14 = arith.constant 0 : index
    %25 = vector.load %arg6[%c0_13, %c0_14] : memref<32x4xf32, #tpu.memory_space<vmem>>, vector<32x4xf32>
    %cst_15 = arith.constant dense<0.000000e+00> : vector<64x4xf32>
    %26 = tpu.matmul %24, %25, %cst_15 {dimension_numbers = #tpu.dot_dimension_numbers<[1], [0], [0], [1], [0, 0, 1, 1], [], []>} : vector<64x32xf32>, vector<32x4xf32>, vector<64x4xf32> -> vector<64x4xf32>
    %c0_16 = arith.constant 0 : index
    %c0_17 = arith.constant 0 : index
    %27 = vector.load %arg7[%c0_16, %c0_17] : memref<1x4xf32, #tpu.memory_space<vmem>>, vector<1x4xf32>
    %28 = vector.broadcast %27 : vector<1x4xf32> to vector<64x4xf32>
    %29 = arith.addf %26, %28 : vector<64x4xf32>
    %c0_18 = arith.constant 0 : index
    %c0_19 = arith.constant 0 : index
    %30 = vector.load %arg8[%c0_18, %c0_19] : memref<64x4xf32, #tpu.memory_space<vmem>>, vector<64x4xf32>
    tpu.vector_store %arg8[%c0_18, %c0_19], %29 {strides = array<i32>} : memref<64x4xf32, #tpu.memory_space<vmem>>, vector<64x4xf32>,
    return
  }
  func.func @transform_0(%arg0: i32) -> (i32, i32) {
    %c0_i32 = arith.constant 0 : i32
    %c0_i32_0 = arith.constant 0 : i32
    return %arg0, %c0_i32 : i32, i32
  }
  func.func @transform_1(%arg0: i32) -> (i32, i32) {
    %c0_i32 = arith.constant 0 : i32
    %c0_i32_0 = arith.constant 0 : i32
    %c0_i32_1 = arith.constant 0 : i32
    return %c0_i32, %c0_i32_0 : i32, i32
  }
  func.func @transform_2(%arg0: i32) -> (i32, i32) {
    %c0_i32 = arith.constant 0 : i32
    %c0_i32_0 = arith.constant 0 : i32
    %c0_i32_1 = arith.constant 0 : i32
    return %c0_i32, %c0_i32_0 : i32, i32
  }
  func.func @transform_3(%arg0: i32) -> (i32, i32) {
    %c0_i32 = arith.constant 0 : i32
    %c0_i32_0 = arith.constant 0 : i32
    %c0_i32_1 = arith.constant 0 : i32
    return %c0_i32, %c0_i32_0 : i32, i32
  }
  func.func @transform_4(%arg0: i32) -> (i32, i32) {
    %c0_i32 = arith.constant 0 : i32
    %c0_i32_0 = arith.constant 0 : i32
    %c0_i32_1 = arith.constant 0 : i32
    return %c0_i32, %c0_i32_0 : i32, i32
  }
  func.func @transform_5(%arg0: i32) -> (i32, i32) {
    %c0_i32 = arith.constant 0 : i32
    %c0_i32_0 = arith.constant 0 : i32
    %c0_i32_1 = arith.constant 0 : i32
    return %c0_i32, %c0_i32_0 : i32, i32
  }
  func.func @transform_6(%arg0: i32) -> (i32, i32) {
    %c0_i32 = arith.constant 0 : i32
    %c0_i32_0 = arith.constant 0 : i32
    %c0_i32_1 = arith.constant 0 : i32
    return %c0_i32, %c0_i32_0 : i32, i32
  }
  func.func @transform_7(%arg0: i32) -> (i32, i32) {
    %c0_i32 = arith.constant 0 : i32
    %c0_i32_0 = arith.constant 0 : i32
    return %arg0, %c0_i32 : i32, i32
  }
}

</mosaic_0001>

<llo_original>
// kernel: nn_baseline_forward.1
$region0: #{nn_baseline_forward.1}
  #allocation0 [shape = 'u32[]', space=smem, size = 0x4, offset = 0x4, fixed_abs, tag = 'smem constant byte address 0x4 - core index']
  #allocation1 [shape = 'u32[72,128]{1,0:T(1,128)}', space=vmem, size = 0x9000, scoped, tag = 'internal scratch']
  %s0 = inlined_call_operand.vmem [shape: s32[128,2], index: 0, kind: input, shape index: {}]
  %s1 = inlined_call_operand.vmem [shape: f32[8,32], index: 1, kind: input, shape index: {}]
  %s2 = inlined_call_operand.vmem [shape: f32[32,32], index: 2, kind: input, shape index: {}]
  %s3 = inlined_call_operand.vmem [shape: f32[32,32], index: 3, kind: input, shape index: {}]
  %s4 = inlined_call_operand.vmem [shape: f32[1,32], index: 4, kind: input, shape index: {}]
  %s5 = inlined_call_operand.vmem [shape: f32[32,4], index: 5, kind: input, shape index: {}]
  %s6 = inlined_call_operand.vmem [shape: f32[1,4], index: 6, kind: input, shape index: {}]
  %s7 = inlined_call_operand.vmem [shape: f32[128,4], index: 7, kind: output, shape index: {}]
  %s8 = sld [smem:[#allocation0]]
  $region61: #{nn_baseline_forward.1} parent=0
    _
  %s10 = ssub.s32 1, %s8
  %s11 = scalar_select 0, %s10, %s8
  loop: start=0, step=1, limit=4
  $region2: #{nn_baseline_forward.1} parent=0 // loop_pre_header
    _
  $region3: #{nn_baseline_forward.1} parent=0 // loop_header
    %s13 = sphi 0, %s17
    %p14 = scmp.ge.s32.totalorder %s13, 4
    %s23 = sphi 0, %s25
    %s26 = sphi 0, %s23
    %s27 = sphi 0, %s26
    %s43 = sphi 0, %s27
    %s47 = sphi 0, %s47
    %s49 = sphi 0, %s47
    %s50 = sphi 0, %s49
    %s64 = sphi 0, %s50
    %s68 = sphi 0, %s68
    %s70 = sphi 0, %s68
    %s71 = sphi 0, %s70
    %s85 = sphi 0, %s71
    %s89 = sphi 0, %s89
    %s91 = sphi 0, %s89
    %s92 = sphi 0, %s91
    %s106 = sphi 0, %s92
    %s110 = sphi 0, %s110
    %s112 = sphi 0, %s110
    %s113 = sphi 0, %s112
    %s127 = sphi 0, %s113
    %s131 = sphi 0, %s131
    %s133 = sphi 0, %s131
    %s134 = sphi 0, %s133
    %s148 = sphi 0, %s134
    %s152 = sphi 0, %s152
    %s154 = sphi 0, %s152
    %s155 = sphi 0, %s154
    %s169 = sphi 0, %s155
    %s175 = sphi 0, %s177
    %s178 = sphi 0, %s175
    %s179 = sphi 0, %s178
    %s195 = sphi 0, %s179
  $region4: #{nn_baseline_forward.1} parent=0 // loop_header_branch
    %16 = sbr.rel (%p14) target = $region8
  $region5: #{nn_baseline_forward.1} parent=0 // loop_body
    %s18 = ssub.s32 %s13, 1
    %s19 = ssub.s32 %s13, 2
    %s20 = sadd.s32 %s13, 1
    %s21 = ssub.s32 %s13, %s20
    %p22 = scmp.eq.s32.totalorder %s21, 0
    %s24 = sadd.s32 %s23, 1
    %s25 = scalar_select %p22, %s23, %s24
    %p28 = pneg %p22
    %p29 = scmp.eq.s32.totalorder %s13, 1
    %p30 = por %p28, %p29
    %p31 = scmp.ne.s32.totalorder %s23, %s26
    %p32 = scmp.eq.s32.totalorder %s13, 0
    %p33 = por %p31, %p32
    %p34 = scmp.ne.s32.totalorder %s23, %s26
    %p35 = scmp.eq.s32.totalorder %s18, 1
    %p36 = por %p34, %p35
    %p37 = scmp.ne.s32.totalorder %s26, %s27
    %p38 = scmp.eq.s32.totalorder %s18, 0
    %p39 = por %p37, %p38
    %p40 = scmp.ne.s32.totalorder %s26, %s27
    %p41 = scmp.eq.s32.totalorder %s19, 1
    %p42 = por %p40, %p41
    %p44 = scmp.ne.s32.totalorder %s27, %s43
    %p45 = scmp.eq.s32.totalorder %s19, 0
    %p46 = por %p44, %p45
    %s48 = sadd.s32 %s47, 1
    %p51 = scmp.eq.s32.totalorder %s13, 1
    %p52 = scmp.ne.s32.totalorder %s47, %s49
    %p53 = scmp.eq.s32.totalorder %s13, 0
    %p54 = por %p52, %p53
    %p55 = scmp.ne.s32.totalorder %s47, %s49
    %p56 = scmp.eq.s32.totalorder %s18, 1
    %p57 = por %p55, %p56
    %p58 = scmp.ne.s32.totalorder %s49, %s50
    %p59 = scmp.eq.s32.totalorder %s18, 0
    %p60 = por %p58, %p59
    %p61 = scmp.ne.s32.totalorder %s49, %s50
    %p62 = scmp.eq.s32.totalorder %s19, 1
    %p63 = por %p61, %p62
    %p65 = scmp.ne.s32.totalorder %s50, %s64
    %p66 = scmp.eq.s32.totalorder %s19, 0
    %p67 = por %p65, %p66
    %s69 = sadd.s32 %s68, 1
    %p72 = scmp.eq.s32.totalorder %s13, 1
    %p73 = scmp.ne.s32.totalorder %s68, %s70
    %p74 = scmp.eq.s32.totalorder %s13, 0
    %p75 = por %p73, %p74
    %p76 = scmp.ne.s32.totalorder %s68, %s70
    %p77 = scmp.eq.s32.totalorder %s18, 1
    %p78 = por %p76, %p77
    %p79 = scmp.ne.s32.totalorder %s70, %s71
    %p80 = scmp.eq.s32.totalorder %s18, 0
    %p81 = por %p79, %p80
    %p82 = scmp.ne.s32.totalorder %s70, %s71
    %p83 = scmp.eq.s32.totalorder %s19, 1
    %p84 = por %p82, %p83
    %p86 = scmp.ne.s32.totalorder %s71, %s85
    %p87 = scmp.eq.s32.totalorder %s19, 0
    %p88 = por %p86, %p87
    %s90 = sadd.s32 %s89, 1
    %p93 = scmp.eq.s32.totalorder %s13, 1
    %p94 = scmp.ne.s32.totalorder %s89, %s91
    %p95 = scmp.eq.s32.totalorder %s13, 0
    %p96 = por %p94, %p95
    %p97 = scmp.ne.s32.totalorder %s89, %s91
    %p98 = scmp.eq.s32.totalorder %s18, 1
    %p99 = por %p97, %p98
    %p100 = scmp.ne.s32.totalorder %s91, %s92
    %p101 = scmp.eq.s32.totalorder %s18, 0
    %p102 = por %p100, %p101
    %p103 = scmp.ne.s32.totalorder %s91, %s92
    %p104 = scmp.eq.s32.totalorder %s19, 1
    %p105 = por %p103, %p104
    %p107 = scmp.ne.s32.totalorder %s92, %s106
    %p108 = scmp.eq.s32.totalorder %s19, 0
    %p109 = por %p107, %p108
    %s111 = sadd.s32 %s110, 1
    %p114 = scmp.eq.s32.totalorder %s13, 1
    %p115 = scmp.ne.s32.totalorder %s110, %s112
    %p116 = scmp.eq.s32.totalorder %s13, 0
    %p117 = por %p115, %p116
    %p118 = scmp.ne.s32.totalorder %s110, %s112
    %p119 = scmp.eq.s32.totalorder %s18, 1
    %p120 = por %p118, %p119
    %p121 = scmp.ne.s32.totalorder %s112, %s113
    %p122 = scmp.eq.s32.totalorder %s18, 0
    %p123 = por %p121, %p122
    %p124 = scmp.ne.s32.totalorder %s112, %s113
    %p125 = scmp.eq.s32.totalorder %s19, 1
    %p126 = por %p124, %p125
    %p128 = scmp.ne.s32.totalorder %s113, %s127
    %p129 = scmp.eq.s32.totalorder %s19, 0
    %p130 = por %p128, %p129
    %s132 = sadd.s32 %s131, 1
    %p135 = scmp.eq.s32.totalorder %s13, 1
    %p136 = scmp.ne.s32.totalorder %s131, %s133
    %p137 = scmp.eq.s32.totalorder %s13, 0
    %p138 = por %p136, %p137
    %p139 = scmp.ne.s32.totalorder %s131, %s133
    %p140 = scmp.eq.s32.totalorder %s18, 1
    %p141 = por %p139, %p140
    %p142 = scmp.ne.s32.totalorder %s133, %s134
    %p143 = scmp.eq.s32.totalorder %s18, 0
    %p144 = por %p142, %p143
    %p145 = scmp.ne.s32.totalorder %s133, %s134
    %p146 = scmp.eq.s32.totalorder %s19, 1
    %p147 = por %p145, %p146
    %p149 = scmp.ne.s32.totalorder %s134, %s148
    %p150 = scmp.eq.s32.totalorder %s19, 0
    %p151 = por %p149, %p150
    %s153 = sadd.s32 %s152, 1
    %p156 = scmp.eq.s32.totalorder %s13, 1
    %p157 = scmp.ne.s32.totalorder %s152, %s154
    %p158 = scmp.eq.s32.totalorder %s13, 0
    %p159 = por %p157, %p158
    %p160 = scmp.ne.s32.totalorder %s152, %s154
    %p161 = scmp.eq.s32.totalorder %s18, 1
    %p162 = por %p160, %p161
    %p163 = scmp.ne.s32.totalorder %s154, %s155
    %p164 = scmp.eq.s32.totalorder %s18, 0
    %p165 = por %p163, %p164
    %p166 = scmp.ne.s32.totalorder %s154, %s155
    %p167 = scmp.eq.s32.totalorder %s19, 1
    %p168 = por %p166, %p167
    %p170 = scmp.ne.s32.totalorder %s155, %s169
    %p171 = scmp.eq.s32.totalorder %s19, 0
    %p172 = por %p170, %p171
    %s173 = ssub.s32 %s13, %s20
    %p174 = scmp.eq.s32.totalorder %s173, 0
    %s176 = sadd.s32 %s175, 1
    %s177 = scalar_select %p174, %s175, %s176
    %p180 = pneg %p174
    %p181 = scmp.eq.s32.totalorder %s13, 1
    %p182 = por %p180, %p181
    %p183 = scmp.ne.s32.totalorder %s175, %s178
    %p184 = scmp.eq.s32.totalorder %s13, 0
    %p185 = por %p183, %p184
    %p186 = scmp.ne.s32.totalorder %s175, %s178
    %p187 = scmp.eq.s32.totalorder %s18, 1
    %p188 = por %p186, %p187
    %p189 = scmp.ne.s32.totalorder %s178, %s179
    %p190 = scmp.eq.s32.totalorder %s18, 0
    %p191 = por %p189, %p190
    %p192 = scmp.ne.s32.totalorder %s178, %s179
    %p193 = scmp.eq.s32.totalorder %s19, 1
    %p194 = por %p192, %p193
    %p196 = scmp.ne.s32.totalorder %s179, %s195
    %p197 = scmp.eq.s32.totalorder %s19, 0
    %p198 = por %p196, %p197
    %p199 = scmp.le.s32.totalorder 1, %s13
    %p200 = scmp.lt.s32.totalorder %s13, 3
    %p201 = pnand %p199, %p200
    %p202 = pneg %p201
    // Predicated region
    $region9: #{nn_baseline_forward.1} parent=5 // pred_check
      _
    $region10: #{nn_baseline_forward.1} parent=5 // pred_check_branch
      %204 = sbr.rel (%p201) target = $region12
    $region11: #{nn_baseline_forward.1} parent=5 // pred_region
      %s205 = ssub.s32 %s13, 1
      // Predicated region
      $region13: #{nn_baseline_forward.1} parent=11 // pred_check
        %p206 = pneg %p60
      $region14: #{nn_baseline_forward.1} parent=11 // pred_check_branch
        %208 = sbr.rel (%p206) target = $region16
      $region15: #{nn_baseline_forward.1} parent=11 // pred_region
        _
      $region16: #{nn_baseline_forward.1} parent=11 // pred_fallthru
        _
      // Predicated region
      $region17: #{nn_baseline_forward.1} parent=11 // pred_check
        %p209 = pneg %p81
      $region18: #{nn_baseline_forward.1} parent=11 // pred_check_branch
        %211 = sbr.rel (%p209) target = $region20
      $region19: #{nn_baseline_forward.1} parent=11 // pred_region
        _
      $region20: #{nn_baseline_forward.1} parent=11 // pred_fallthru
        _
      // Predicated region
      $region21: #{nn_baseline_forward.1} parent=11 // pred_check
        %p212 = pneg %p102
      $region22: #{nn_baseline_forward.1} parent=11 // pred_check_branch
        %214 = sbr.rel (%p212) target = $region24
      $region23: #{nn_baseline_forward.1} parent=11 // pred_region
        _
      $region24: #{nn_baseline_forward.1} parent=11 // pred_fallthru
        _
      // Predicated region
      $region25: #{nn_baseline_forward.1} parent=11 // pred_check
        %p215 = pneg %p123
      $region26: #{nn_baseline_forward.1} parent=11 // pred_check_branch
        %217 = sbr.rel (%p215) target = $region28
      $region27: #{nn_baseline_forward.1} parent=11 // pred_region
        _
      $region28: #{nn_baseline_forward.1} parent=11 // pred_fallthru
        _
      // Predicated region
      $region29: #{nn_baseline_forward.1} parent=11 // pred_check
        %p218 = pneg %p144
      $region30: #{nn_baseline_forward.1} parent=11 // pred_check_branch
        %220 = sbr.rel (%p218) target = $region32
      $region31: #{nn_baseline_forward.1} parent=11 // pred_region
        _
      $region32: #{nn_baseline_forward.1} parent=11 // pred_fallthru
        _
      // Predicated region
      $region33: #{nn_baseline_forward.1} parent=11 // pred_check
        %p221 = pneg %p165
      $region34: #{nn_baseline_forward.1} parent=11 // pred_check_branch
        %223 = sbr.rel (%p221) target = $region36
      $region35: #{nn_baseline_forward.1} parent=11 // pred_region
        _
      $region36: #{nn_baseline_forward.1} parent=11 // pred_fallthru
        _
    $region12: #{nn_baseline_forward.1} parent=5 // pred_fallthru
      _
    %p224 = scmp.lt.s32.totalorder %s13, 2
    // Predicated region
    $region37: #{nn_baseline_forward.1} parent=5 // pred_check
      %p225 = pneg %p224
    $region38: #{nn_baseline_forward.1} parent=5 // pred_check_branch
      %227 = sbr.rel (%p225) target = $region40
    $region39: #{nn_baseline_forward.1} parent=5 // pred_region
      // Predicated region
      $region41: #{nn_baseline_forward.1} parent=39 // pred_check
        %p228 = pneg %p33
      $region42: #{nn_baseline_forward.1} parent=39 // pred_check_branch
        %230 = sbr.rel (%p228) target = $region44
      $region43: #{nn_baseline_forward.1} parent=39 // pred_region
        %s231 = smul.u32 8, %s13
        %p232 = scmp.lt.s32.totalorder %s231, 15
        %s233 = scalar_select %p232, %s231, 15
        %s234 = smul.addr %s233, 8
        %s235 = scalar_lea.vmem %s0, %s234
        %s236 = smul.u32 8, %s13
      $region44: #{nn_baseline_forward.1} parent=39 // pred_fallthru
        _
    $region40: #{nn_baseline_forward.1} parent=5 // pred_fallthru
      _
    %p237 = scmp.le.s32.totalorder 1, %s13
    %p238 = scmp.lt.s32.totalorder %s13, 3
    %p239 = pnand %p237, %p238
    %p240 = pneg %p239
    // Predicated region
    $region45: #{nn_baseline_forward.1} parent=5 // pred_check
      _
    $region46: #{nn_baseline_forward.1} parent=5 // pred_check_branch
      %242 = sbr.rel (%p239) target = $region48
    $region47: #{nn_baseline_forward.1} parent=5 // pred_region
      %s243 = ssub.s32 %s13, 1
      %s244 = smul.u32 8, %s18
      %p245 = scmp.lt.s32.totalorder %s244, 15
      %s246 = scalar_select %p245, %s244, 15
      %s247 = smul.addr %s246, 8
      %s248 = scalar_lea.vmem %s0, %s247
      %p249 = pneg %p39
      %p250 = pneg %p36
      %p251 = pneg %p60
      %p252 = pneg %p57
      %p253 = pneg %p81
      %p254 = pneg %p78
      %p255 = pneg %p102
      %p256 = pneg %p99
      %p257 = pneg %p123
      %p258 = pneg %p120
      %p259 = pneg %p144
      %p260 = pneg %p141
      %p261 = pneg %p165
      %p262 = pneg %p162
      %p263 = pneg %p191
      %p264 = pneg %p188
      %s265 = smul.u32 8, %s18
      %p266 = scmp.lt.s32.totalorder %s265, 15
      %s267 = scalar_select %p266, %s265, 15
      %s268 = smul.addr %s267, 8
      %s269 = scalar_lea.vmem %s7, %s268
      %s270 = smul.u32 8, %s18
      %p271 = scmp.lt.s32.totalorder %s270, 15
      %s272 = scalar_select %p271, %s270, 15
      %s273 = smul.addr %s272, 8
      %s274 = scalar_lea.vmem %s0, %s273
      %s275 = smul.u32 8, %s18
      %s276 = smul.u32 8, %s18
      %p277 = scmp.lt.s32.totalorder %s276, 15
      %s278 = scalar_select %p277, %s276, 15
      %s279 = smul.addr %s278, 8
      %s280 = scalar_lea.vmem %s7, %s279
      %s281 = smul.u32 8, %s18
      %v282 = vld [vmem:[%s274] sm:$0xff]
      %v283 = vld [vmem:[%s274 + $0x8] sm:$0xff]
      %v284 = vld [vmem:[%s274 + $0x10] sm:$0xff]
      %v285 = vld [vmem:[%s274 + $0x18] sm:$0xff]
      %v286 = vld [vmem:[%s274 + $0x20] sm:$0xff]
      %v287 = vld [vmem:[%s274 + $0x28] sm:$0xff]
      %v288 = vld [vmem:[%s274 + $0x30] sm:$0xff]
      %v289 = vld [vmem:[%s274 + $0x38] sm:$0xff]
      %v290 = vlaneseq
      %v291 = vand.u32 %v290, 127
      %292 = vset.pattern.permute.xlu0 0
      %293 = vperm.xlu0 %292, %v282
      %v294 = vpop.permute.xlu0 %293
      %295 = vset.pattern.permute.xlu0 0
      %296 = vperm.xlu0 %295, %v283
      %v297 = vpop.permute.xlu0 %296
      %298 = vset.pattern.permute.xlu0 0
      %299 = vperm.xlu0 %298, %v284
      %v300 = vpop.permute.xlu0 %299
      %301 = vset.pattern.permute.xlu0 0
      %302 = vperm.xlu0 %301, %v285
      %v303 = vpop.permute.xlu0 %302
      %304 = vset.pattern.permute.xlu0 0
      %305 = vperm.xlu0 %304, %v286
      %v306 = vpop.permute.xlu0 %305
      %307 = vset.pattern.permute.xlu0 0
      %308 = vperm.xlu0 %307, %v287
      %v309 = vpop.permute.xlu0 %308
      %310 = vset.pattern.permute.xlu0 0
      %311 = vperm.xlu0 %310, %v288
      %v312 = vpop.permute.xlu0 %311
      %313 = vset.pattern.permute.xlu0 0
      %314 = vperm.xlu0 %313, %v289
      %v315 = vpop.permute.xlu0 %314
      %vm316 = vcmp.eq.s32.totalorder %v294, %v291
      %vm317 = vcmp.eq.s32.totalorder %v297, %v291
      %vm318 = vcmp.eq.s32.totalorder %v300, %v291
      %vm319 = vcmp.eq.s32.totalorder %v303, %v291
      %vm320 = vcmp.eq.s32.totalorder %v306, %v291
      %vm321 = vcmp.eq.s32.totalorder %v309, %v291
      %vm322 = vcmp.eq.s32.totalorder %v312, %v291
      %vm323 = vcmp.eq.s32.totalorder %v315, %v291
      %v324 = vsel %vm316, 1, 0
      %v325 = vsel %vm317, 1, 0
      %v326 = vsel %vm318, 1, 0
      %v327 = vsel %vm319, 1, 0
      %v328 = vsel %vm320, 1, 0
      %v329 = vsel %vm321, 1, 0
      %v330 = vsel %vm322, 1, 0
      %v331 = vsel %vm323, 1, 0
      %v332 = vcvt.s32.f32 %v324
      %v333 = vcvt.s32.f32 %v325
      %v334 = vcvt.s32.f32 %v326
      %v335 = vcvt.s32.f32 %v327
      %v336 = vcvt.s32.f32 %v328
      %v337 = vcvt.s32.f32 %v329
      %v338 = vcvt.s32.f32 %v330
      %v339 = vcvt.s32.f32 %v331
      %340 = vset.pattern.permute.xlu0 1
      %341 = vperm.xlu0 %340, %v282
      %v342 = vpop.permute.xlu0 %341
      %343 = vset.pattern.permute.xlu0 1
      %344 = vperm.xlu0 %343, %v283
      %v345 = vpop.permute.xlu0 %344
      %346 = vset.pattern.permute.xlu0 1
      %347 = vperm.xlu0 %346, %v284
      %v348 = vpop.permute.xlu0 %347
      %349 = vset.pattern.permute.xlu0 1
      %350 = vperm.xlu0 %349, %v285
      %v351 = vpop.permute.xlu0 %350
      %352 = vset.pattern.permute.xlu0 1
      %353 = vperm.xlu0 %352, %v286
      %v354 = vpop.permute.xlu0 %353
      %355 = vset.pattern.permute.xlu0 1
      %356 = vperm.xlu0 %355, %v287
      %v357 = vpop.permute.xlu0 %356
      %358 = vset.pattern.permute.xlu0 1
      %359 = vperm.xlu0 %358, %v288
      %v360 = vpop.permute.xlu0 %359
      %361 = vset.pattern.permute.xlu0 1
      %362 = vperm.xlu0 %361, %v289
      %v363 = vpop.permute.xlu0 %362
      %vm364 = vcmp.eq.s32.totalorder %v342, %v291
      %vm365 = vcmp.eq.s32.totalorder %v345, %v291
      %vm366 = vcmp.eq.s32.totalorder %v348, %v291
      %vm367 = vcmp.eq.s32.totalorder %v351, %v291
      %vm368 = vcmp.eq.s32.totalorder %v354, %v291
      %vm369 = vcmp.eq.s32.totalorder %v357, %v291
      %vm370 = vcmp.eq.s32.totalorder %v360, %v291
      %vm371 = vcmp.eq.s32.totalorder %v363, %v291
      %v372 = vsel %vm364, 1, 0
      %v373 = vsel %vm365, 1, 0
      %v374 = vsel %vm366, 1, 0
      %v375 = vsel %vm367, 1, 0
      %v376 = vsel %vm368, 1, 0
      %v377 = vsel %vm369, 1, 0
      %v378 = vsel %vm370, 1, 0
      %v379 = vsel %vm371, 1, 0
      %v380 = vcvt.s32.f32 %v372
      %v381 = vcvt.s32.f32 %v373
      %v382 = vcvt.s32.f32 %v374
      %v383 = vcvt.s32.f32 %v375
      %v384 = vcvt.s32.f32 %v376
      %v385 = vcvt.s32.f32 %v377
      %v386 = vcvt.s32.f32 %v378
      %v387 = vcvt.s32.f32 %v379
      %v388 = vld [vmem:[%s1] sm:$0xff]
      %vm389 = vcmask 64512
      %v391 = vsel %vm389, %v332, 0
      %v394 = vsel %vm389, %v333, 0
      %v397 = vsel %vm389, %v334, 0
      %v400 = vsel %vm389, %v335, 0
      %v403 = vsel %vm389, %v336, 0
      %v406 = vsel %vm389, %v337, 0
      %v409 = vsel %vm389, %v338, 0
      %v412 = vsel %vm389, %v339, 0
      %414 = vmatpush.msra.mxu0 0.0
      %415 = vmatpush.msra.mxu0 0.0
      %416 = vmatpush.msra.mxu0 0.0
      %417 = vmatpush.msra.mxu0 0.0
      %418 = vmatpush.msra.mxu0 0.0
      %419 = vmatpush.msra.mxu0 0.0
      %420 = vmatpush.msra.mxu0 0.0
      %421 = vmatpush.msra.mxu0 0.0
      %422 = vmatpush.msra.mxu0 0.0
      %423 = vmatpush.msra.mxu0 0.0
      %424 = vmatpush.msra.mxu0 0.0
      %425 = vmatpush.msra.mxu0 0.0
      %426 = vmatpush.msra.mxu0 0.0
      %427 = vmatpush.msra.mxu0 0.0
      %428 = vmatpush.msra.mxu0 0.0
      %429 = vmatpush.msra.mxu0 %v388
      %430 = vmatmul.f32.gmra.mxu0 %v391
      %v431 = vpop.f32.mrf.mxu0
      %v432 = vadd.f32 0.0, %v431
      %433 = vmatmul.f32.gmra.mxu0 %v394
      %v434 = vpop.f32.mrf.mxu0
      %v435 = vadd.f32 0.0, %v434
      %436 = vmatmul.f32.gmra.mxu0 %v397
      %v437 = vpop.f32.mrf.mxu0
      %v438 = vadd.f32 0.0, %v437
      %439 = vmatmul.f32.gmra.mxu0 %v400
      %v440 = vpop.f32.mrf.mxu0
      %v441 = vadd.f32 0.0, %v440
      %442 = vmatmul.f32.gmra.mxu0 %v403
      %v443 = vpop.f32.mrf.mxu0
      %v444 = vadd.f32 0.0, %v443
      %445 = vmatmul.f32.gmra.mxu0 %v406
      %v446 = vpop.f32.mrf.mxu0
      %v447 = vadd.f32 0.0, %v446
      %448 = vmatmul.f32.gmra.mxu0 %v409
      %v449 = vpop.f32.mrf.mxu0
      %v450 = vadd.f32 0.0, %v449
      %451 = vmatmul.f32.gmra.mxu0 %v412
      %v452 = vpop.f32.mrf.mxu0
      %v453 = vadd.f32 0.0, %v452
      %454 = vdwg.mxu0
      %v456 = vsel %vm389, %v380, 0
      %v459 = vsel %vm389, %v381, 0
      %v462 = vsel %vm389, %v382, 0
      %v465 = vsel %vm389, %v383, 0
      %v468 = vsel %vm389, %v384, 0
      %v471 = vsel %vm389, %v385, 0
      %v474 = vsel %vm389, %v386, 0
      %v477 = vsel %vm389, %v387, 0
      %479 = vmatpush.msra.mxu0 0.0
      %480 = vmatpush.msra.mxu0 0.0
      %481 = vmatpush.msra.mxu0 0.0
      %482 = vmatpush.msra.mxu0 0.0
      %483 = vmatpush.msra.mxu0 0.0
      %484 = vmatpush.msra.mxu0 0.0
      %485 = vmatpush.msra.mxu0 0.0
      %486 = vmatpush.msra.mxu0 0.0
      %487 = vmatpush.msra.mxu0 0.0
      %488 = vmatpush.msra.mxu0 0.0
      %489 = vmatpush.msra.mxu0 0.0
      %490 = vmatpush.msra.mxu0 0.0
      %491 = vmatpush.msra.mxu0 0.0
      %492 = vmatpush.msra.mxu0 0.0
      %493 = vmatpush.msra.mxu0 0.0
      %494 = vmatpush.msra.mxu0 %v388
      %495 = vmatmul.f32.gmra.mxu0 %v456
      %v496 = vpop.f32.mrf.mxu0
      %v497 = vadd.f32 0.0, %v496
      %498 = vmatmul.f32.gmra.mxu0 %v459
      %v499 = vpop.f32.mrf.mxu0
      %v500 = vadd.f32 0.0, %v499
      %501 = vmatmul.f32.gmra.mxu0 %v462
      %v502 = vpop.f32.mrf.mxu0
      %v503 = vadd.f32 0.0, %v502
      %504 = vmatmul.f32.gmra.mxu0 %v465
      %v505 = vpop.f32.mrf.mxu0
      %v506 = vadd.f32 0.0, %v505
      %507 = vmatmul.f32.gmra.mxu0 %v468
      %v508 = vpop.f32.mrf.mxu0
      %v509 = vadd.f32 0.0, %v508
      %510 = vmatmul.f32.gmra.mxu0 %v471
      %v511 = vpop.f32.mrf.mxu0
      %v512 = vadd.f32 0.0, %v511
      %513 = vmatmul.f32.gmra.mxu0 %v474
      %v514 = vpop.f32.mrf.mxu0
      %v515 = vadd.f32 0.0, %v514
      %516 = vmatmul.f32.gmra.mxu0 %v477
      %v517 = vpop.f32.mrf.mxu0
      %v518 = vadd.f32 0.0, %v517
      %519 = vdwg.mxu0
      %v520 = vld [vmem:[%s2] sm:$0xff]
      %v521 = vld [vmem:[%s2 + $0x8] sm:$0xff]
      %v522 = vld [vmem:[%s2 + $0x10] sm:$0xff]
      %v523 = vld [vmem:[%s2 + $0x18] sm:$0xff]
      %v524 = vld [vmem:[%s3] sm:$0xff]
      %v525 = vld [vmem:[%s3 + $0x8] sm:$0xff]
      %v526 = vld [vmem:[%s3 + $0x10] sm:$0xff]
      %v527 = vld [vmem:[%s3 + $0x18] sm:$0xff]
      %vm528 = vcmask 261120
      %v530 = vsel %vm528, %v497, 0
      %v533 = vsel %vm528, %v500, 0
      %v536 = vsel %vm528, %v503, 0
      %v539 = vsel %vm528, %v506, 0
      %v542 = vsel %vm528, %v509, 0
      %v545 = vsel %vm528, %v512, 0
      %v548 = vsel %vm528, %v515, 0
      %v551 = vsel %vm528, %v518, 0
      %553 = vmatpush.msra.mxu0 0.0
      %554 = vmatpush.msra.mxu0 0.0
      %555 = vmatpush.msra.mxu0 0.0
      %556 = vmatpush.msra.mxu0 0.0
      %557 = vmatpush.msra.mxu0 0.0
      %558 = vmatpush.msra.mxu0 0.0
      %559 = vmatpush.msra.mxu0 0.0
      %560 = vmatpush.msra.mxu0 0.0
      %561 = vmatpush.msra.mxu0 0.0
      %562 = vmatpush.msra.mxu0 0.0
      %563 = vmatpush.msra.mxu0 0.0
      %564 = vmatpush.msra.mxu0 0.0
      %565 = vmatpush.msra.mxu0 %v527
      %566 = vmatpush.msra.mxu0 %v526
      %567 = vmatpush.msra.mxu0 %v525
      %568 = vmatpush.msra.mxu0 %v524
      %569 = vmatmul.f32.gmra.mxu0 %v530
      %v570 = vpop.f32.mrf.mxu0
      %v571 = vadd.f32 0.0, %v570
      %572 = vmatmul.f32.gmra.mxu0 %v533
      %v573 = vpop.f32.mrf.mxu0
      %v574 = vadd.f32 0.0, %v573
      %575 = vmatmul.f32.gmra.mxu0 %v536
      %v576 = vpop.f32.mrf.mxu0
      %v577 = vadd.f32 0.0, %v576
      %578 = vmatmul.f32.gmra.mxu0 %v539
      %v579 = vpop.f32.mrf.mxu0
      %v580 = vadd.f32 0.0, %v579
      %581 = vmatmul.f32.gmra.mxu0 %v542
      %v582 = vpop.f32.mrf.mxu0
      %v583 = vadd.f32 0.0, %v582
      %584 = vmatmul.f32.gmra.mxu0 %v545
      %v585 = vpop.f32.mrf.mxu0
      %v586 = vadd.f32 0.0, %v585
      %587 = vmatmul.f32.gmra.mxu0 %v548
      %v588 = vpop.f32.mrf.mxu0
      %v589 = vadd.f32 0.0, %v588
      %590 = vmatmul.f32.gmra.mxu0 %v551
      %v591 = vpop.f32.mrf.mxu0
      %v592 = vadd.f32 0.0, %v591
      %593 = vdwg.mxu0
      %v595 = vsel %vm528, %v432, 0
      %v598 = vsel %vm528, %v435, 0
      %v601 = vsel %vm528, %v438, 0
      %v604 = vsel %vm528, %v441, 0
      %v607 = vsel %vm528, %v444, 0
      %v610 = vsel %vm528, %v447, 0
      %v613 = vsel %vm528, %v450, 0
      %v616 = vsel %vm528, %v453, 0
      %618 = vmatpush.msra.mxu0 0.0
      %619 = vmatpush.msra.mxu0 0.0
      %620 = vmatpush.msra.mxu0 0.0
      %621 = vmatpush.msra.mxu0 0.0
      %622 = vmatpush.msra.mxu0 0.0
      %623 = vmatpush.msra.mxu0 0.0
      %624 = vmatpush.msra.mxu0 0.0
      %625 = vmatpush.msra.mxu0 0.0
      %626 = vmatpush.msra.mxu0 0.0
      %627 = vmatpush.msra.mxu0 0.0
      %628 = vmatpush.msra.mxu0 0.0
      %629 = vmatpush.msra.mxu0 0.0
      %630 = vmatpush.msra.mxu0 %v523
      %631 = vmatpush.msra.mxu0 %v522
      %632 = vmatpush.msra.mxu0 %v521
      %633 = vmatpush.msra.mxu0 %v520
      %634 = vmatmul.f32.gmra.mxu0 %v595
      %v635 = vpop.f32.mrf.mxu0
      %v636 = vadd.f32 %v571, %v635
      %637 = vmatmul.f32.gmra.mxu0 %v598
      %v638 = vpop.f32.mrf.mxu0
      %v639 = vadd.f32 %v574, %v638
      %640 = vmatmul.f32.gmra.mxu0 %v601
      %v641 = vpop.f32.mrf.mxu0
      %v642 = vadd.f32 %v577, %v641
      %643 = vmatmul.f32.gmra.mxu0 %v604
      %v644 = vpop.f32.mrf.mxu0
      %v645 = vadd.f32 %v580, %v644
      %646 = vmatmul.f32.gmra.mxu0 %v607
      %v647 = vpop.f32.mrf.mxu0
      %v648 = vadd.f32 %v583, %v647
      %649 = vmatmul.f32.gmra.mxu0 %v610
      %v650 = vpop.f32.mrf.mxu0
      %v651 = vadd.f32 %v586, %v650
      %652 = vmatmul.f32.gmra.mxu0 %v613
      %v653 = vpop.f32.mrf.mxu0
      %v654 = vadd.f32 %v589, %v653
      %655 = vmatmul.f32.gmra.mxu0 %v616
      %v656 = vpop.f32.mrf.mxu0
      %v657 = vadd.f32 %v592, %v656
      %658 = vdwg.mxu0
      %v659 = vld [vmem:[%s4] sm:$0x1]
      %v661 = vperm.slane %v659, 0
      %v663 = vadd.f32 %v636, %v661
      %v664 = vadd.f32 %v639, %v661
      %v665 = vadd.f32 %v642, %v661
      %v666 = vadd.f32 %v645, %v661
      %v667 = vadd.f32 %v648, %v661
      %v668 = vadd.f32 %v651, %v661
      %v669 = vadd.f32 %v654, %v661
      %v670 = vadd.f32 %v657, %v661
      %v671 = vmax.f32 %v663, 0.0
      %v672 = vmax.f32 %v664, 0.0
      %v673 = vmax.f32 %v665, 0.0
      %v674 = vmax.f32 %v666, 0.0
      %v675 = vmax.f32 %v667, 0.0
      %v676 = vmax.f32 %v668, 0.0
      %v677 = vmax.f32 %v669, 0.0
      %v678 = vmax.f32 %v670, 0.0
      %v679 = vld [vmem:[%s5] sm:$0xff]
      %v680 = vld [vmem:[%s5 + $0x8] sm:$0xff]
      %v681 = vld [vmem:[%s5 + $0x10] sm:$0xff]
      %v682 = vld [vmem:[%s5 + $0x18] sm:$0xff]
      %v683 = vld [vmem:[%s6] sm:$0x1]
      %v685 = vperm.slane %v683, 0
      %v688 = vsel %vm528, %v671, 0
      %v691 = vsel %vm528, %v672, 0
      %v694 = vsel %vm528, %v673, 0
      %v697 = vsel %vm528, %v674, 0
      %v700 = vsel %vm528, %v675, 0
      %v703 = vsel %vm528, %v676, 0
      %v706 = vsel %vm528, %v677, 0
      %v709 = vsel %vm528, %v678, 0
      %711 = vmatpush.msra.mxu0 0.0
      %712 = vmatpush.msra.mxu0 0.0
      %713 = vmatpush.msra.mxu0 0.0
      %714 = vmatpush.msra.mxu0 0.0
      %715 = vmatpush.msra.mxu0 0.0
      %716 = vmatpush.msra.mxu0 0.0
      %717 = vmatpush.msra.mxu0 0.0
      %718 = vmatpush.msra.mxu0 0.0
      %719 = vmatpush.msra.mxu0 0.0
      %720 = vmatpush.msra.mxu0 0.0
      %721 = vmatpush.msra.mxu0 0.0
      %722 = vmatpush.msra.mxu0 0.0
      %723 = vmatpush.msra.mxu0 %v682
      %724 = vmatpush.msra.mxu0 %v681
      %725 = vmatpush.msra.mxu0 %v680
      %726 = vmatpush.msra.mxu0 %v679
      %727 = vmatmul.f32.gmra.mxu0 %v688
      %v728 = vpop.f32.mrf.mxu0
      %v729 = vadd.f32 %v685, %v728
      %730 = vmatmul.f32.gmra.mxu0 %v691
      %v731 = vpop.f32.mrf.mxu0
      %v732 = vadd.f32 %v685, %v731
      %733 = vmatmul.f32.gmra.mxu0 %v694
      %v734 = vpop.f32.mrf.mxu0
      %v735 = vadd.f32 %v685, %v734
      %736 = vmatmul.f32.gmra.mxu0 %v697
      %v737 = vpop.f32.mrf.mxu0
      %v738 = vadd.f32 %v685, %v737
      %739 = vmatmul.f32.gmra.mxu0 %v700
      %v740 = vpop.f32.mrf.mxu0
      %v741 = vadd.f32 %v685, %v740
      %742 = vmatmul.f32.gmra.mxu0 %v703
      %v743 = vpop.f32.mrf.mxu0
      %v744 = vadd.f32 %v685, %v743
      %745 = vmatmul.f32.gmra.mxu0 %v706
      %v746 = vpop.f32.mrf.mxu0
      %v747 = vadd.f32 %v685, %v746
      %748 = vmatmul.f32.gmra.mxu0 %v709
      %v749 = vpop.f32.mrf.mxu0
      %v750 = vadd.f32 %v685, %v749
      %751 = vdwg.mxu0
      %vm752 = vcmask 31744
      %753 = vst.msk [vmem:[%s280] sm:$0xff] %vm752, %v729
      %754 = vst.msk [vmem:[%s280 + $0x8] sm:$0xff] %vm752, %v732
      %755 = vst.msk [vmem:[%s280 + $0x10] sm:$0xff] %vm752, %v735
      %756 = vst.msk [vmem:[%s280 + $0x18] sm:$0xff] %vm752, %v738
      %757 = vst.msk [vmem:[%s280 + $0x20] sm:$0xff] %vm752, %v741
      %758 = vst.msk [vmem:[%s280 + $0x28] sm:$0xff] %vm752, %v744
      %759 = vst.msk [vmem:[%s280 + $0x30] sm:$0xff] %vm752, %v747
      %760 = vst.msk [vmem:[%s280 + $0x38] sm:$0xff] %vm752, %v750
      %s761 = smul.u32 8, %s18
      %p762 = scmp.lt.s32.totalorder %s761, 15
      %s763 = scalar_select %p762, %s761, 15
      %s764 = smul.addr %s763, 8
      %s765 = scalar_lea.vmem %s7, %s764
      // Predicated region
      $region49: #{nn_baseline_forward.1} parent=47 // pred_check
        %p766 = pneg %p188
      $region50: #{nn_baseline_forward.1} parent=47 // pred_check_branch
        %768 = sbr.rel (%p766) target = $region52
      $region51: #{nn_baseline_forward.1} parent=47 // pred_region
        %s769 = smul.u32 8, %s18
      $region52: #{nn_baseline_forward.1} parent=47 // pred_fallthru
        _
    $region48: #{nn_baseline_forward.1} parent=5 // pred_fallthru
      _
    %p770 = scmp.le.s32.totalorder 2, %s13
    // Predicated region
    $region53: #{nn_baseline_forward.1} parent=5 // pred_check
      %p771 = pneg %p770
    $region54: #{nn_baseline_forward.1} parent=5 // pred_check_branch
      %773 = sbr.rel (%p771) target = $region56
    $region55: #{nn_baseline_forward.1} parent=5 // pred_region
      %s774 = ssub.s32 %s13, 2
      // Predicated region
      $region57: #{nn_baseline_forward.1} parent=55 // pred_check
        %p775 = pneg %p194
      $region58: #{nn_baseline_forward.1} parent=55 // pred_check_branch
        %777 = sbr.rel (%p775) target = $region60
      $region59: #{nn_baseline_forward.1} parent=55 // pred_region
        %s778 = smul.u32 8, %s19
        %p779 = scmp.lt.s32.totalorder %s778, 15
        %s780 = scalar_select %p779, %s778, 15
        %s781 = smul.addr %s780, 8
        %s782 = scalar_lea.vmem %s7, %s781
      $region60: #{nn_baseline_forward.1} parent=55 // pred_fallthru
        _
    $region56: #{nn_baseline_forward.1} parent=5 // pred_fallthru
      _
  $region6: #{nn_baseline_forward.1} parent=0 // loop_footer
    %s17 = sadd.s32 1, %s13
  $region7: #{nn_baseline_forward.1} parent=0 // loop_footer_branch
    %12 = sbr.rel target = $region3
  $region8: #{nn_baseline_forward.1} parent=0 // loop_exit
    _

</llo_original>
